<compile_context>
chip_gen: v6e
topology: v6e:2x2x1
jax: 0.10.0
libtpu: 0.0.40
codegen_flags: <defaults>
</compile_context>

<pallas_src>
import jax
import jax.numpy as jnp
from jax.experimental import pallas as pl
from jax.experimental.pallas import tpu as pltpu


# --------------------------------------------------------------------------
# Kernels
# --------------------------------------------------------------------------
def ff_kernel_split(x_ref, h_ref, wjx_ref, wjh_ref, wkx_ref, wkh_ref,
                    bj_ref, bk_ref, out_ref):
    """Per-gate weight layout (used when U % 128 != 0): no lane slices.
       x_ref/h_ref: (bm, U); w_*: (U, U); b_*: (1, U); out: (bm, U)."""
    wdt = wjx_ref.dtype
    x = x_ref[...].astype(wdt)          # no-op cast when dtypes already match
    h_raw = h_ref[...]
    h = h_raw.astype(wdt)

    j = jax.nn.sigmoid(
        jnp.dot(x, wjx_ref[...], preferred_element_type=jnp.float32)
        + jnp.dot(h, wjh_ref[...], preferred_element_type=jnp.float32)
        + bj_ref[...])
    k = jax.nn.sigmoid(
        jnp.dot(x, wkx_ref[...], preferred_element_type=jnp.float32)
        + jnp.dot(h, wkh_ref[...], preferred_element_type=jnp.float32)
        + bk_ref[...])

    hf = h_raw.astype(jnp.float32)
    # j*(1-h) + (1-k)*h  ==  j + h*(1 - j - k)
    out_ref[...] = (j + hf * (1.0 - j - k)).astype(out_ref.dtype)


def ff_kernel_fused(x_ref, h_ref, wx_ref, wh_ref, b_ref, out_ref):
    """Fused lane-aligned layout (used when U % 128 == 0).
       x_ref/h_ref: (bm, U); w_x/w_h: (U, 2U); b: (1, 2U); out: (bm, U)."""
    U = out_ref.shape[-1]
    wdt = wx_ref.dtype
    x = x_ref[...].astype(wdt)
    h_raw = h_ref[...]
    h = h_raw.astype(wdt)

    gates = (jnp.dot(x, wx_ref[...], preferred_element_type=jnp.float32)
             + jnp.dot(h, wh_ref[...], preferred_element_type=jnp.float32)
             + b_ref[...])
    jk = jax.nn.sigmoid(gates)          # (bm, 2U): [j | k]
    j = jk[:, :U]                       # tile-aligned slice (U % 128 == 0)
    k = jk[:, U:]

    hf = h_raw.astype(jnp.float32)
    out_ref[...] = (j + hf * (1.0 - j - k)).astype(out_ref.dtype)


# --------------------------------------------------------------------------
# One-time parameter packing (hoisted out of the per-step path)
# --------------------------------------------------------------------------
def prepare_params(params, weights_dtype=None):
    """Pack PyTorch-convention params (w_* (U,U) [out,in], b_* (U,)).
       weights_dtype=None keeps the original dtype; pass jnp.bfloat16 for the
       MXU-native path (gates tolerate the cast; re-validate with a looser
       tolerance)."""
    U = params["w_jx"].shape[0]

    def cvt(a):
        return a if weights_dtype is None else a.astype(weights_dtype)

    if U % 128 == 0:
        # Fused layout: one (U, 2U) weight per input stream -> two dots.
        w_x = jnp.concatenate([params["w_jx"].T, params["w_kx"].T], axis=1)
        w_h = jnp.concatenate([params["w_jh"].T, params["w_kh"].T], axis=1)
        b = jnp.concatenate([params["b_jx"] + params["b_jh"],
                             params["b_kx"] + params["b_kh"]]).reshape(1, 2 * U)
        return {"layout": "fused", "units": U,
                "w_x": cvt(w_x), "w_h": cvt(w_h),
                "b": b.astype(jnp.float32)}

    # Split layout: per-gate (U, U) weights -> four dots, no lane slices.
    b_j = (params["b_jx"] + params["b_jh"]).reshape(1, U)
    b_k = (params["b_kx"] + params["b_kh"]).reshape(1, U)
    return {"layout": "split", "units": U,
            "w_jx": cvt(params["w_jx"].T), "w_jh": cvt(params["w_jh"].T),
            "w_kx": cvt(params["w_kx"].T), "w_kh": cvt(params["w_kh"].T),
            "b_j": b_j.astype(jnp.float32), "b_k": b_k.astype(jnp.float32)}


# --------------------------------------------------------------------------
# Wrapper
# --------------------------------------------------------------------------
def _round_up(n, m):
    return ((n + m - 1) // m) * m


def _choose_bm(batch, units, itemsize):
    """Batch tile: full batch when small; else large (<=1024-row) tiles that
       (a) give >= 2 grid steps (v7x megacore) and (b) keep the double-buffered
       activation working set (x, h, out) inside a conservative VMEM budget."""
    if batch <= 128:
        return batch
    act_budget = 16 * 1024 * 1024                      # activations only
    rows_fit = act_budget // (3 * 2 * units * itemsize)  # 3 arrays x 2 buffers
    rows_fit = max(8, (rows_fit // 8) * 8)
    bm = min(1024, _round_up(pl.cdiv(batch, 2), 8), rows_fit)
    return max(8, bm)


def ff_forward(inputs, prev_output, packed):
    """Single-step FF cell forward using pre-packed params."""
    B, U = inputs.shape
    assert packed["units"] == U

    bm = _choose_bm(B, U, inputs.dtype.itemsize)
    grid = (pl.cdiv(B, bm),)

    act_spec = pl.BlockSpec((bm, U), lambda i: (i, 0))
    out_spec = pl.BlockSpec((bm, U), lambda i: (i, 0))
    const = lambda i: (0, 0)   # weights / bias stay VMEM-resident across tiles

    compiler_params = pltpu.CompilerParams(
        dimension_semantics=("parallel",),
        # Explicit budget: above v5e's 16 MiB / v6e-v7x 32 MiB defaults, safely
        # below v7x's 64 MiB physical VMEM.
        vmem_limit_bytes=48 * 1024 * 1024,
    )

    if packed["layout"] == "fused":
        kernel = ff_kernel_fused
        operands = (inputs, prev_output,
                    packed["w_x"], packed["w_h"], packed["b"])
        weight_specs = [
            pl.BlockSpec((U, 2 * U), const),
            pl.BlockSpec((U, 2 * U), const),
            pl.BlockSpec((1, 2 * U), const),
        ]
    else:
        kernel = ff_kernel_split
        operands = (inputs, prev_output,
                    packed["w_jx"], packed["w_jh"],
                    packed["w_kx"], packed["w_kh"],
                    packed["b_j"], packed["b_k"])
        weight_specs = ([pl.BlockSpec((U, U), const)] * 4
                        + [pl.BlockSpec((1, U), const)] * 2)

    return pl.pallas_call(
        kernel,
        out_shape=jax.ShapeDtypeStruct((B, U), inputs.dtype),
        grid=grid,
        in_specs=[act_spec, act_spec] + weight_specs,
        out_specs=out_spec,
        compiler_params=compiler_params,
    )(*operands)


# --------------------------------------------------------------------------
# Pure-JAX reference (matches PyTorch semantics)
# --------------------------------------------------------------------------
def ff_reference(inputs, prev_output, params):
    def lin(x, w, b):
        return x @ w.T + b
    j = jax.nn.sigmoid(lin(inputs, params["w_jx"], params["b_jx"])
                       + lin(prev_output, params["w_jh"], params["b_jh"]))
    k = jax.nn.sigmoid(lin(inputs, params["w_kx"], params["b_kx"])
                       + lin(prev_output, params["w_kh"], params["b_kh"]))
    return j * (1.0 - prev_output) + (1.0 - k) * prev_output


# --------------------------------------------------------------------------
# Demo / correctness check
# --------------------------------------------------------------------------
if __name__ == "__main__":
    key = jax.random.PRNGKey(0)

    def make_case(k, batch, units):
        keys = jax.random.split(k, 10)
        bound = 1.0 / jnp.sqrt(units)

        def u(kk, shape):
            return jax.random.uniform(kk, shape, jnp.float32, -bound, bound)

        params = {
            "w_jh": u(keys[0], (units, units)), "b_jh": u(keys[1], (units,)),
            "w_jx": u(keys[2], (units, units)), "b_jx": u(keys[3], (units,)),
            "w_kh": u(keys[4], (units, units)), "b_kh": u(keys[5], (units,)),
            "w_kx": u(keys[6], (units, units)), "b_kx": u(keys[7], (units,)),
        }
        inputs = jax.random.normal(keys[8], (batch, units), jnp.float32)
        prev_output = jax.nn.sigmoid(
            jax.random.normal(keys[9], (batch, units), jnp.float32))
        return params, inputs, prev_output

    cases = [
        (8, 32),      # split layout (U % 128 != 0), single grid step
        (16, 128),    # fused lane-aligned layout (U % 128 == 0)
        (300, 32),    # multi-step batch grid with a partial last tile
    ]

    for i, (batch, units) in enumerate(cases):
        params, inputs, prev_output = make_case(jax.random.fold_in(key, i),
                                                batch, units)
        ref = ff_reference(inputs, prev_output, params)

        # f32 weights (exact semantics).
        packed = prepare_params(params)
        out = jax.block_until_ready(ff_forward(inputs, prev_output, packed))
        assert out.shape == (batch, units)
        assert jnp.allclose(out, ref, atol=1e-5, rtol=1e-5), \
            f"f32 mismatch for case {(batch, units)}"

        # bf16-packed weights (MXU-native path); gates tolerate the cast.
        packed_bf16 = prepare_params(params, weights_dtype=jnp.bfloat16)
        out_bf16 = jax.block_until_ready(
            ff_forward(inputs, prev_output, packed_bf16))
        assert jnp.allclose(out_bf16, ref, atol=5e-2), \
            f"bf16 mismatch for case {(batch, units)}"

    print("KERNEL_OK")
</pallas_src>

<mosaic_0001>
module attributes {stable_mosaic.version = 11 : i64} {
  func.func @ff_kernel_split(%arg0: i32, %arg1: memref<8x32xf32, #tpu.memory_space<vmem>>, %arg2: memref<8x32xf32, #tpu.memory_space<vmem>>, %arg3: memref<32x32xf32, #tpu.memory_space<vmem>>, %arg4: memref<32x32xf32, #tpu.memory_space<vmem>>, %arg5: memref<32x32xf32, #tpu.memory_space<vmem>>, %arg6: memref<32x32xf32, #tpu.memory_space<vmem>>, %arg7: memref<1x32xf32, #tpu.memory_space<vmem>>, %arg8: memref<1x32xf32, #tpu.memory_space<vmem>>, %arg9: memref<8x32xf32, #tpu.memory_space<vmem>>) attributes {dimension_semantics = [#tpu.dimension_semantics<parallel>], iteration_bounds = array<i64: 1>, scalar_prefetch = 0 : i64, scratch_operands = 0 : i64, tpu.core_type = #tpu.core_type<tc>, window_params = [{transform_indices = @transform_0, window_bounds = array<i64: 8, 32>}, {transform_indices = @transform_1, window_bounds = array<i64: 8, 32>}, {pipeline_mode = #tpu.pipeline_mode<synchronous>, transform_indices = @transform_2, window_bounds = array<i64: 32, 32>}, {pipeline_mode = #tpu.pipeline_mode<synchronous>, transform_indices = @transform_3, window_bounds = array<i64: 32, 32>}, {pipeline_mode = #tpu.pipeline_mode<synchronous>, transform_indices = @transform_4, window_bounds = array<i64: 32, 32>}, {pipeline_mode = #tpu.pipeline_mode<synchronous>, transform_indices = @transform_5, window_bounds = array<i64: 32, 32>}, {pipeline_mode = #tpu.pipeline_mode<synchronous>, transform_indices = @transform_6, window_bounds = array<i64: 1, 32>}, {pipeline_mode = #tpu.pipeline_mode<synchronous>, transform_indices = @transform_7, window_bounds = array<i64: 1, 32>}, {transform_indices = @transform_8, window_bounds = array<i64: 8, 32>}]} {
    %c0 = arith.constant 0 : index
    %c0_0 = arith.constant 0 : index
    %0 = vector.load %arg1[%c0, %c0_0] : memref<8x32xf32, #tpu.memory_space<vmem>>, vector<8x32xf32>
    %c0_1 = arith.constant 0 : index
    %c0_2 = arith.constant 0 : index
    %1 = vector.load %arg2[%c0_1, %c0_2] : memref<8x32xf32, #tpu.memory_space<vmem>>, vector<8x32xf32>
    %c0_3 = arith.constant 0 : index
    %c0_4 = arith.constant 0 : index
    %2 = vector.load %arg3[%c0_3, %c0_4] : memref<32x32xf32, #tpu.memory_space<vmem>>, vector<32x32xf32>
    %cst = arith.constant dense<0.000000e+00> : vector<8x32xf32>
    %3 = tpu.matmul %0, %2, %cst {dimension_numbers = #tpu.dot_dimension_numbers<[1], [0], [0], [1], [0, 0, 1, 1], [], []>} : vector<8x32xf32>, vector<32x32xf32>, vector<8x32xf32> -> vector<8x32xf32>
    %c0_5 = arith.constant 0 : index
    %c0_6 = arith.constant 0 : index
    %4 = vector.load %arg4[%c0_5, %c0_6] : memref<32x32xf32, #tpu.memory_space<vmem>>, vector<32x32xf32>
    %cst_7 = arith.constant dense<0.000000e+00> : vector<8x32xf32>
    %5 = tpu.matmul %1, %4, %cst_7 {dimension_numbers = #tpu.dot_dimension_numbers<[1], [0], [0], [1], [0, 0, 1, 1], [], []>} : vector<8x32xf32>, vector<32x32xf32>, vector<8x32xf32> -> vector<8x32xf32>
    %6 = arith.addf %3, %5 : vector<8x32xf32>
    %c0_8 = arith.constant 0 : index
    %c0_9 = arith.constant 0 : index
    %7 = vector.load %arg7[%c0_8, %c0_9] : memref<1x32xf32, #tpu.memory_space<vmem>>, vector<1x32xf32>
    %8 = vector.broadcast %7 : vector<1x32xf32> to vector<8x32xf32>
    %9 = arith.addf %6, %8 : vector<8x32xf32>
    %10 = arith.negf %9 : vector<8x32xf32>
    %11 = math.exp %10 : vector<8x32xf32>
    %cst_10 = arith.constant 1.000000e+00 : f32
    %12 = vector.broadcast %cst_10 : f32 to vector<8x32xf32>
    %13 = arith.addf %12, %11 : vector<8x32xf32>
    %14 = arith.divf %12, %13 : vector<8x32xf32>
    %c0_11 = arith.constant 0 : index
    %c0_12 = arith.constant 0 : index
    %15 = vector.load %arg5[%c0_11, %c0_12] : memref<32x32xf32, #tpu.memory_space<vmem>>, vector<32x32xf32>
    %cst_13 = arith.constant dense<0.000000e+00> : vector<8x32xf32>
    %16 = tpu.matmul %0, %15, %cst_13 {dimension_numbers = #tpu.dot_dimension_numbers<[1], [0], [0], [1], [0, 0, 1, 1], [], []>} : vector<8x32xf32>, vector<32x32xf32>, vector<8x32xf32> -> vector<8x32xf32>
    %c0_14 = arith.constant 0 : index
    %c0_15 = arith.constant 0 : index
    %17 = vector.load %arg6[%c0_14, %c0_15] : memref<32x32xf32, #tpu.memory_space<vmem>>, vector<32x32xf32>
    %cst_16 = arith.constant dense<0.000000e+00> : vector<8x32xf32>
    %18 = tpu.matmul %1, %17, %cst_16 {dimension_numbers = #tpu.dot_dimension_numbers<[1], [0], [0], [1], [0, 0, 1, 1], [], []>} : vector<8x32xf32>, vector<32x32xf32>, vector<8x32xf32> -> vector<8x32xf32>
    %19 = arith.addf %16, %18 : vector<8x32xf32>
    %c0_17 = arith.constant 0 : index
    %c0_18 = arith.constant 0 : index
    %20 = vector.load %arg8[%c0_17, %c0_18] : memref<1x32xf32, #tpu.memory_space<vmem>>, vector<1x32xf32>
    %21 = vector.broadcast %20 : vector<1x32xf32> to vector<8x32xf32>
    %22 = arith.addf %19, %21 : vector<8x32xf32>
    %23 = arith.negf %22 : vector<8x32xf32>
    %24 = math.exp %23 : vector<8x32xf32>
    %cst_19 = arith.constant 1.000000e+00 : f32
    %25 = vector.broadcast %cst_19 : f32 to vector<8x32xf32>
    %26 = arith.addf %25, %24 : vector<8x32xf32>
    %27 = arith.divf %25, %26 : vector<8x32xf32>
    %cst_20 = arith.constant 1.000000e+00 : f32
    %28 = vector.broadcast %cst_20 : f32 to vector<8x32xf32>
    %29 = arith.subf %28, %14 : vector<8x32xf32>
    %30 = arith.subf %29, %27 : vector<8x32xf32>
    %31 = arith.mulf %1, %30 : vector<8x32xf32>
    %32 = arith.addf %14, %31 : vector<8x32xf32>
    %c0_21 = arith.constant 0 : index
    %c0_22 = arith.constant 0 : index
    %33 = vector.load %arg9[%c0_21, %c0_22] : memref<8x32xf32, #tpu.memory_space<vmem>>, vector<8x32xf32>
    tpu.vector_store %arg9[%c0_21, %c0_22], %32 {strides = array<i32>} : memref<8x32xf32, #tpu.memory_space<vmem>>, vector<8x32xf32>,
    return
  }
  func.func @transform_0(%arg0: i32) -> (i32, i32) {
    %c0_i32 = arith.constant 0 : i32
    %c0_i32_0 = arith.constant 0 : i32
    return %arg0, %c0_i32 : i32, i32
  }
  func.func @transform_1(%arg0: i32) -> (i32, i32) {
    %c0_i32 = arith.constant 0 : i32
    %c0_i32_0 = arith.constant 0 : i32
    return %arg0, %c0_i32 : i32, i32
  }
  func.func @transform_2(%arg0: i32) -> (i32, i32) {
    %c0_i32 = arith.constant 0 : i32
    %c0_i32_0 = arith.constant 0 : i32
    %c0_i32_1 = arith.constant 0 : i32
    return %c0_i32, %c0_i32_0 : i32, i32
  }
  func.func @transform_3(%arg0: i32) -> (i32, i32) {
    %c0_i32 = arith.constant 0 : i32
    %c0_i32_0 = arith.constant 0 : i32
    %c0_i32_1 = arith.constant 0 : i32
    return %c0_i32, %c0_i32_0 : i32, i32
  }
  func.func @transform_4(%arg0: i32) -> (i32, i32) {
    %c0_i32 = arith.constant 0 : i32
    %c0_i32_0 = arith.constant 0 : i32
    %c0_i32_1 = arith.constant 0 : i32
    return %c0_i32, %c0_i32_0 : i32, i32
  }
  func.func @transform_5(%arg0: i32) -> (i32, i32) {
    %c0_i32 = arith.constant 0 : i32
    %c0_i32_0 = arith.constant 0 : i32
    %c0_i32_1 = arith.constant 0 : i32
    return %c0_i32, %c0_i32_0 : i32, i32
  }
  func.func @transform_6(%arg0: i32) -> (i32, i32) {
    %c0_i32 = arith.constant 0 : i32
    %c0_i32_0 = arith.constant 0 : i32
    %c0_i32_1 = arith.constant 0 : i32
    return %c0_i32, %c0_i32_0 : i32, i32
  }
  func.func @transform_7(%arg0: i32) -> (i32, i32) {
    %c0_i32 = arith.constant 0 : i32
    %c0_i32_0 = arith.constant 0 : i32
    %c0_i32_1 = arith.constant 0 : i32
    return %c0_i32, %c0_i32_0 : i32, i32
  }
  func.func @transform_8(%arg0: i32) -> (i32, i32) {
    %c0_i32 = arith.constant 0 : i32
    %c0_i32_0 = arith.constant 0 : i32
    return %arg0, %c0_i32 : i32, i32
  }
}

</mosaic_0001>

<llo_original>
// kernel: tpu_custom_call.1
$region0: #{tpu_custom_call.1}
  #allocation0 [shape = 'u32[]', space=smem, size = 0x4, offset = 0x4, fixed_abs, tag = 'smem constant byte address 0x4 - core index']
  #allocation1 [shape = 'u32[144,128]{1,0:T(1,128)}', space=vmem, size = 0x12000, scoped, tag = 'internal scratch']
  %s0 = inlined_call_operand.hbm [shape: f32[8,32], index: 0, kind: input, shape index: {}]
  %s1 = inlined_call_operand.hbm [shape: f32[8,32], index: 1, kind: input, shape index: {}]
  %s2 = inlined_call_operand.hbm [shape: f32[32,32], index: 2, kind: input, shape index: {}]
  %s3 = inlined_call_operand.hbm [shape: f32[32,32], index: 3, kind: input, shape index: {}]
  %s4 = inlined_call_operand.hbm [shape: f32[32,32], index: 4, kind: input, shape index: {}]
  %s5 = inlined_call_operand.hbm [shape: f32[32,32], index: 5, kind: input, shape index: {}]
  %s6 = inlined_call_operand.vmem [shape: f32[1,32], index: 6, kind: input, shape index: {}]
  %s7 = inlined_call_operand.vmem [shape: f32[1,32], index: 7, kind: input, shape index: {}]
  %s8 = inlined_call_operand.hbm [shape: f32[8,32], index: 8, kind: output, shape index: {}]
  %s9 = sld [smem:[#allocation0]]
  $region66: #{tpu_custom_call.1} parent=0
    _
  %s11 = ssub.s32 1, %s9
  %s12 = scalar_select 0, %s11, %s9
  $region1: #{tpu_custom_call.1} parent=0
    #allocation2 [shape = 'u8[4096]{0}', space=vmem, size = 0x1000, scoped, tag = 'input window, operand 0, single buffered']
    #allocation3 [shape = 's32[1]{0}', space=sflag, size = 0x4, scoped, tag = 'scoped memory for tpu_custom_call.1']
    #allocation4 [shape = 's32[1]{0}', space=sflag, size = 0x4, scoped, tag = 'scoped memory for tpu_custom_call.1']
    #allocation5 [shape = 'u8[4096]{0}', space=vmem, size = 0x1000, scoped, tag = 'input window, operand 1, single buffered']
    #allocation6 [shape = 's32[1]{0}', space=sflag, size = 0x4, scoped, tag = 'scoped memory for tpu_custom_call.1']
    #allocation7 [shape = 'u8[16384]{0}', space=vmem, size = 0x4000, scoped, tag = 'input window, operand 2, single buffered']
    #allocation8 [shape = 'u8[16384]{0}', space=vmem, size = 0x4000, scoped, tag = 'input window, operand 3, single buffered']
    #allocation9 [shape = 's32[1]{0}', space=sflag, size = 0x4, scoped, tag = 'scoped memory for tpu_custom_call.1']
    #allocation10 [shape = 'u8[16384]{0}', space=vmem, size = 0x4000, scoped, tag = 'input window, operand 4, single buffered']
    #allocation11 [shape = 'u8[16384]{0}', space=vmem, size = 0x4000, scoped, tag = 'input window, operand 5, single buffered']
    #allocation12 [shape = 's32[1]{0}', space=sflag, size = 0x4, scoped, tag = 'scoped memory for tpu_custom_call.1']
    #allocation13 [shape = 'u8[4096]{0}', space=vmem, size = 0x1000, scoped, tag = 'output window, operand 0, single buffered']
    %13 = vsyncpa [#allocation3], 0
    %14 = vsyncpa [#allocation6], 0
    %15 = vsyncpa [#allocation9], 0
    %16 = vsyncpa [#allocation12], 0
    %17 = vsyncpa [#allocation4], 0
    // Predicated region
    $region2: #{tpu_custom_call.1} parent=1 // pred_check
      _
    $region3: #{tpu_custom_call.1} parent=1 // pred_check_branch
      %19 = sbr.rel (0) target = $region5
    $region4: #{tpu_custom_call.1} parent=1 // pred_region
      %s21 = ssub.s32 128, 128
      %22 = vsyncadd [#allocation3], %s21
      %s24 = sshll.u32 [#allocation2], 4
      %s25 = int_to_ptr.vmem [resolvable:$true] %s24
      %27 = dma.hbm_to_vmem [thread:$0]  %s0, 128, %s25, [#allocation3]
    $region5: #{tpu_custom_call.1} parent=1 // pred_fallthru
      _
    // Predicated region
    $region6: #{tpu_custom_call.1} parent=1 // pred_check
      _
    $region7: #{tpu_custom_call.1} parent=1 // pred_check_branch
      %29 = sbr.rel (0) target = $region9
    $region8: #{tpu_custom_call.1} parent=1 // pred_region
      %s31 = ssub.s32 128, 128
      %32 = vsyncadd [#allocation6], %s31
      %s34 = sshll.u32 [#allocation5], 4
      %s35 = int_to_ptr.vmem [resolvable:$true] %s34
      %37 = dma.hbm_to_vmem [thread:$0]  %s1, 128, %s35, [#allocation6]
    $region9: #{tpu_custom_call.1} parent=1 // pred_fallthru
      _
    // Predicated region
    $region10: #{tpu_custom_call.1} parent=1 // pred_check
      _
    $region11: #{tpu_custom_call.1} parent=1 // pred_check_branch
      %39 = sbr.rel (0) target = $region13
    $region12: #{tpu_custom_call.1} parent=1 // pred_region
      %s41 = ssub.s32 512, 512
      %42 = vsyncadd [#allocation6], %s41
      %s43 = sshll.u32 [#allocation7], 4
      %s44 = int_to_ptr.vmem [resolvable:$true] %s43
      %49 = dma.hbm_to_vmem [thread:$0]  %s2, 512, %s44, [#allocation6], 128, 128, 8
    $region13: #{tpu_custom_call.1} parent=1 // pred_fallthru
      _
    // Predicated region
    $region14: #{tpu_custom_call.1} parent=1 // pred_check
      _
    $region15: #{tpu_custom_call.1} parent=1 // pred_check_branch
      %51 = sbr.rel (0) target = $region17
    $region16: #{tpu_custom_call.1} parent=1 // pred_region
      %s53 = ssub.s32 512, 512
      %54 = vsyncadd [#allocation9], %s53
      %s55 = sshll.u32 [#allocation8], 4
      %s56 = int_to_ptr.vmem [resolvable:$true] %s55
      %61 = dma.hbm_to_vmem [thread:$0]  %s3, 512, %s56, [#allocation9], 128, 128, 8
    $region17: #{tpu_custom_call.1} parent=1 // pred_fallthru
      _
    // Predicated region
    $region18: #{tpu_custom_call.1} parent=1 // pred_check
      _
    $region19: #{tpu_custom_call.1} parent=1 // pred_check_branch
      %63 = sbr.rel (0) target = $region21
    $region20: #{tpu_custom_call.1} parent=1 // pred_region
      %s65 = ssub.s32 512, 512
      %66 = vsyncadd [#allocation9], %s65
      %s67 = sshll.u32 [#allocation10], 4
      %s68 = int_to_ptr.vmem [resolvable:$true] %s67
      %73 = dma.hbm_to_vmem [thread:$0]  %s4, 512, %s68, [#allocation9], 128, 128, 8
    $region21: #{tpu_custom_call.1} parent=1 // pred_fallthru
      _
    // Predicated region
    $region22: #{tpu_custom_call.1} parent=1 // pred_check
      _
    $region23: #{tpu_custom_call.1} parent=1 // pred_check_branch
      %75 = sbr.rel (0) target = $region25
    $region24: #{tpu_custom_call.1} parent=1 // pred_region
      %s77 = ssub.s32 512, 512
      %78 = vsyncadd [#allocation12], %s77
      %s79 = sshll.u32 [#allocation11], 4
      %s80 = int_to_ptr.vmem [resolvable:$true] %s79
      %85 = dma.hbm_to_vmem [thread:$0]  %s5, 512, %s80, [#allocation12], 128, 128, 8
    $region25: #{tpu_custom_call.1} parent=1 // pred_fallthru
      _
    // Predicated region
    $region26: #{tpu_custom_call.1} parent=1 // pred_check
      _
    $region27: #{tpu_custom_call.1} parent=1 // pred_check_branch
      %87 = sbr.rel (0) target = $region29
    $region28: #{tpu_custom_call.1} parent=1 // pred_region
      _
    $region29: #{tpu_custom_call.1} parent=1 // pred_fallthru
      _
    // Predicated region
    $region30: #{tpu_custom_call.1} parent=1 // pred_check
      _
    $region31: #{tpu_custom_call.1} parent=1 // pred_check_branch
      %89 = sbr.rel (0) target = $region33
    $region32: #{tpu_custom_call.1} parent=1 // pred_region
      _
    $region33: #{tpu_custom_call.1} parent=1 // pred_fallthru
      _
    // Predicated region
    $region34: #{tpu_custom_call.1} parent=1 // pred_check
      _
    $region35: #{tpu_custom_call.1} parent=1 // pred_check_branch
      %91 = sbr.rel (0) target = $region37
    $region36: #{tpu_custom_call.1} parent=1 // pred_region
      %92 = dma.done [#allocation3], 128
    $region37: #{tpu_custom_call.1} parent=1 // pred_fallthru
      _
    // Predicated region
    $region38: #{tpu_custom_call.1} parent=1 // pred_check
      _
    $region39: #{tpu_custom_call.1} parent=1 // pred_check_branch
      %94 = sbr.rel (0) target = $region41
    $region40: #{tpu_custom_call.1} parent=1 // pred_region
      %95 = dma.done [#allocation6], 128
    $region41: #{tpu_custom_call.1} parent=1 // pred_fallthru
      _
    // Predicated region
    $region42: #{tpu_custom_call.1} parent=1 // pred_check
      _
    $region43: #{tpu_custom_call.1} parent=1 // pred_check_branch
      %97 = sbr.rel (0) target = $region45
    $region44: #{tpu_custom_call.1} parent=1 // pred_region
      %98 = dma.done [#allocation6], 512
    $region45: #{tpu_custom_call.1} parent=1 // pred_fallthru
      _
    // Predicated region
    $region46: #{tpu_custom_call.1} parent=1 // pred_check
      _
    $region47: #{tpu_custom_call.1} parent=1 // pred_check_branch
      %100 = sbr.rel (0) target = $region49
    $region48: #{tpu_custom_call.1} parent=1 // pred_region
      %101 = dma.done [#allocation9], 512
    $region49: #{tpu_custom_call.1} parent=1 // pred_fallthru
      _
    // Predicated region
    $region50: #{tpu_custom_call.1} parent=1 // pred_check
      _
    $region51: #{tpu_custom_call.1} parent=1 // pred_check_branch
      %103 = sbr.rel (0) target = $region53
    $region52: #{tpu_custom_call.1} parent=1 // pred_region
      %104 = dma.done [#allocation9], 512
    $region53: #{tpu_custom_call.1} parent=1 // pred_fallthru
      _
    // Predicated region
    $region54: #{tpu_custom_call.1} parent=1 // pred_check
      _
    $region55: #{tpu_custom_call.1} parent=1 // pred_check_branch
      %106 = sbr.rel (0) target = $region57
    $region56: #{tpu_custom_call.1} parent=1 // pred_region
      %107 = dma.done [#allocation12], 512
    $region57: #{tpu_custom_call.1} parent=1 // pred_fallthru
      _
    %v108 = vld [vmem:[#allocation2] sm:$0xff]
    %v109 = vld [vmem:[#allocation5] sm:$0xff]
    %v110 = vld [vmem:[#allocation7] sm:$0xff]
    %v111 = vld [vmem:[#allocation7 + $0x8] sm:$0xff]
    %v112 = vld [vmem:[#allocation7 + $0x10] sm:$0xff]
    %v113 = vld [vmem:[#allocation7 + $0x18] sm:$0xff]
    %v114 = vld [vmem:[#allocation8] sm:$0xff]
    %v115 = vld [vmem:[#allocation8 + $0x8] sm:$0xff]
    %v116 = vld [vmem:[#allocation8 + $0x10] sm:$0xff]
    %v117 = vld [vmem:[#allocation8 + $0x18] sm:$0xff]
    %vm118 = vcmask 261120
    %v120 = vsel %vm118, %v109, 0
    %122 = vmatprep.subr.mxu0 0.0
    %123 = vmatpush1.msra.mxu0 0.0
    %124 = vmatprep.subr.mxu0 0.0
    %125 = vmatpush1.msra.mxu0 0.0
    %126 = vmatprep.subr.mxu0 0.0
    %127 = vmatpush1.msra.mxu0 0.0
    %128 = vmatprep.subr.mxu0 0.0
    %129 = vmatpush1.msra.mxu0 0.0
    %130 = vmatprep.subr.mxu0 0.0
    %131 = vmatpush1.msra.mxu0 0.0
    %132 = vmatprep.subr.mxu0 0.0
    %133 = vmatpush1.msra.mxu0 0.0
    %134 = vmatprep.subr.mxu0 0.0
    %135 = vmatpush1.msra.mxu0 0.0
    %136 = vmatprep.subr.mxu0 0.0
    %137 = vmatpush1.msra.mxu0 0.0
    %138 = vmatprep.subr.mxu0 0.0
    %139 = vmatpush1.msra.mxu0 0.0
    %140 = vmatprep.subr.mxu0 0.0
    %141 = vmatpush1.msra.mxu0 0.0
    %142 = vmatprep.subr.mxu0 0.0
    %143 = vmatpush1.msra.mxu0 0.0
    %144 = vmatprep.subr.mxu0 0.0
    %145 = vmatpush1.msra.mxu0 0.0
    %146 = vmatprep.subr.mxu0 0.0
    %147 = vmatpush1.msra.mxu0 %v117
    %148 = vmatprep.subr.mxu0 0.0
    %149 = vmatpush1.msra.mxu0 %v116
    %150 = vmatprep.subr.mxu0 0.0
    %151 = vmatpush1.msra.mxu0 %v115
    %152 = vmatprep.subr.mxu0 0.0
    %153 = vmatpush1.msra.mxu0 %v114
    %154 = vmatprep.subr.mxu0 0.0
    %155 = vmatpush2.msra.mxu0 0.0
    %156 = vmatprep.subr.mxu0 0.0
    %157 = vmatpush2.msra.mxu0 0.0
    %158 = vmatprep.subr.mxu0 0.0
    %159 = vmatpush2.msra.mxu0 0.0
    %160 = vmatprep.subr.mxu0 0.0
    %161 = vmatpush2.msra.mxu0 0.0
    %162 = vmatprep.subr.mxu0 0.0
    %163 = vmatpush2.msra.mxu0 0.0
    %164 = vmatprep.subr.mxu0 0.0
    %165 = vmatpush2.msra.mxu0 0.0
    %166 = vmatprep.subr.mxu0 0.0
    %167 = vmatpush2.msra.mxu0 0.0
    %168 = vmatprep.subr.mxu0 0.0
    %169 = vmatpush2.msra.mxu0 0.0
    %170 = vmatprep.subr.mxu0 0.0
    %171 = vmatpush2.msra.mxu0 0.0
    %172 = vmatprep.subr.mxu0 0.0
    %173 = vmatpush2.msra.mxu0 0.0
    %174 = vmatprep.subr.mxu0 0.0
    %175 = vmatpush2.msra.mxu0 0.0
    %176 = vmatprep.subr.mxu0 0.0
    %177 = vmatpush2.msra.mxu0 0.0
    %178 = vmatprep.subr.mxu0 0.0
    %179 = vmatpush2.msra.mxu0 0.0
    %180 = vmatprep.subr.mxu0 0.0
    %181 = vmatpush2.msra.mxu0 0.0
    %182 = vmatprep.subr.mxu0 0.0
    %183 = vmatpush2.msra.mxu0 0.0
    %184 = vmatprep.subr.mxu0 0.0
    %185 = vmatpush2.msra.mxu0 0.0
    %186 = vmatprep.mubr.f32.mxu0 0.0
    %187 = vmatmul.mubr.f32.gmra.mxu0 %v120
    %v188 = vpop.f32.mrf.mxu0
    %v189 = vadd.f32 0.0, %v188
    %v190 = vpop.f32.mrf.mxu0
    %191 = vdwg.mxu0
    %v193 = vsel %vm118, %v108, 0
    %195 = vmatprep.subr.mxu0 0.0
    %196 = vmatpush1.msra.mxu0 0.0
    %197 = vmatprep.subr.mxu0 0.0
    %198 = vmatpush1.msra.mxu0 0.0
    %199 = vmatprep.subr.mxu0 0.0
    %200 = vmatpush1.msra.mxu0 0.0
    %201 = vmatprep.subr.mxu0 0.0
    %202 = vmatpush1.msra.mxu0 0.0
    %203 = vmatprep.subr.mxu0 0.0
    %204 = vmatpush1.msra.mxu0 0.0
    %205 = vmatprep.subr.mxu0 0.0
    %206 = vmatpush1.msra.mxu0 0.0
    %207 = vmatprep.subr.mxu0 0.0
    %208 = vmatpush1.msra.mxu0 0.0
    %209 = vmatprep.subr.mxu0 0.0
    %210 = vmatpush1.msra.mxu0 0.0
    %211 = vmatprep.subr.mxu0 0.0
    %212 = vmatpush1.msra.mxu0 0.0
    %213 = vmatprep.subr.mxu0 0.0
    %214 = vmatpush1.msra.mxu0 0.0
    %215 = vmatprep.subr.mxu0 0.0
    %216 = vmatpush1.msra.mxu0 0.0
    %217 = vmatprep.subr.mxu0 0.0
    %218 = vmatpush1.msra.mxu0 0.0
    %219 = vmatprep.subr.mxu0 0.0
    %220 = vmatpush1.msra.mxu0 %v113
    %221 = vmatprep.subr.mxu0 0.0
    %222 = vmatpush1.msra.mxu0 %v112
    %223 = vmatprep.subr.mxu0 0.0
    %224 = vmatpush1.msra.mxu0 %v111
    %225 = vmatprep.subr.mxu0 0.0
    %226 = vmatpush1.msra.mxu0 %v110
    %227 = vmatprep.subr.mxu0 0.0
    %228 = vmatpush2.msra.mxu0 0.0
    %229 = vmatprep.subr.mxu0 0.0
    %230 = vmatpush2.msra.mxu0 0.0
    %231 = vmatprep.subr.mxu0 0.0
    %232 = vmatpush2.msra.mxu0 0.0
    %233 = vmatprep.subr.mxu0 0.0
    %234 = vmatpush2.msra.mxu0 0.0
    %235 = vmatprep.subr.mxu0 0.0
    %236 = vmatpush2.msra.mxu0 0.0
    %237 = vmatprep.subr.mxu0 0.0
    %238 = vmatpush2.msra.mxu0 0.0
    %239 = vmatprep.subr.mxu0 0.0
    %240 = vmatpush2.msra.mxu0 0.0
    %241 = vmatprep.subr.mxu0 0.0
    %242 = vmatpush2.msra.mxu0 0.0
    %243 = vmatprep.subr.mxu0 0.0
    %244 = vmatpush2.msra.mxu0 0.0
    %245 = vmatprep.subr.mxu0 0.0
    %246 = vmatpush2.msra.mxu0 0.0
    %247 = vmatprep.subr.mxu0 0.0
    %248 = vmatpush2.msra.mxu0 0.0
    %249 = vmatprep.subr.mxu0 0.0
    %250 = vmatpush2.msra.mxu0 0.0
    %251 = vmatprep.subr.mxu0 0.0
    %252 = vmatpush2.msra.mxu0 0.0
    %253 = vmatprep.subr.mxu0 0.0
    %254 = vmatpush2.msra.mxu0 0.0
    %255 = vmatprep.subr.mxu0 0.0
    %256 = vmatpush2.msra.mxu0 0.0
    %257 = vmatprep.subr.mxu0 0.0
    %258 = vmatpush2.msra.mxu0 0.0
    %259 = vmatprep.mubr.f32.mxu0 0.0
    %260 = vmatmul.mubr.f32.gmra.mxu0 %v193
    %v261 = vpop.f32.mrf.mxu0
    %v262 = vadd.f32 %v189, %v261
    %v263 = vpop.f32.mrf.mxu0
    %264 = vdwg.mxu0
    %v265 = vld [vmem:[%s6] sm:$0x1]
    %v267 = vlaneseq
    %v268 = vshrl.u32 %v267, 7
    %v269 = vsub.s32 0, %v268
    %v270 = vrot.slane %v265, %v269
    %v272 = vadd.f32 %v262, %v270
    %v273 = vxor.u32 %v272, 2147483648
    %v274 = vmul.f32 %v273, 1.442695
    %v275 = vpow.pop %v274
    %v276 = vadd.f32 %v275, 1.0
    %v277 = vrcp.pop %v276
    %v278 = vmul.f32 1.0, %v277
    %v279 = vld [vmem:[#allocation10] sm:$0xff]
    %v280 = vld [vmem:[#allocation10 + $0x8] sm:$0xff]
    %v281 = vld [vmem:[#allocation10 + $0x10] sm:$0xff]
    %v282 = vld [vmem:[#allocation10 + $0x18] sm:$0xff]
    %v283 = vld [vmem:[#allocation11] sm:$0xff]
    %v284 = vld [vmem:[#allocation11 + $0x8] sm:$0xff]
    %v285 = vld [vmem:[#allocation11 + $0x10] sm:$0xff]
    %v286 = vld [vmem:[#allocation11 + $0x18] sm:$0xff]
    %287 = vmatprep.subr.mxu0 0.0
    %288 = vmatpush1.msra.mxu0 0.0
    %289 = vmatprep.subr.mxu0 0.0
    %290 = vmatpush1.msra.mxu0 0.0
    %291 = vmatprep.subr.mxu0 0.0
    %292 = vmatpush1.msra.mxu0 0.0
    %293 = vmatprep.subr.mxu0 0.0
    %294 = vmatpush1.msra.mxu0 0.0
    %295 = vmatprep.subr.mxu0 0.0
    %296 = vmatpush1.msra.mxu0 0.0
    %297 = vmatprep.subr.mxu0 0.0
    %298 = vmatpush1.msra.mxu0 0.0
    %299 = vmatprep.subr.mxu0 0.0
    %300 = vmatpush1.msra.mxu0 0.0
    %301 = vmatprep.subr.mxu0 0.0
    %302 = vmatpush1.msra.mxu0 0.0
    %303 = vmatprep.subr.mxu0 0.0
    %304 = vmatpush1.msra.mxu0 0.0
    %305 = vmatprep.subr.mxu0 0.0
    %306 = vmatpush1.msra.mxu0 0.0
    %307 = vmatprep.subr.mxu0 0.0
    %308 = vmatpush1.msra.mxu0 0.0
    %309 = vmatprep.subr.mxu0 0.0
    %310 = vmatpush1.msra.mxu0 0.0
    %311 = vmatprep.subr.mxu0 0.0
    %312 = vmatpush1.msra.mxu0 %v286
    %313 = vmatprep.subr.mxu0 0.0
    %314 = vmatpush1.msra.mxu0 %v285
    %315 = vmatprep.subr.mxu0 0.0
    %316 = vmatpush1.msra.mxu0 %v284
    %317 = vmatprep.subr.mxu0 0.0
    %318 = vmatpush1.msra.mxu0 %v283
    %319 = vmatprep.subr.mxu0 0.0
    %320 = vmatpush2.msra.mxu0 0.0
    %321 = vmatprep.subr.mxu0 0.0
    %322 = vmatpush2.msra.mxu0 0.0
    %323 = vmatprep.subr.mxu0 0.0
    %324 = vmatpush2.msra.mxu0 0.0
    %325 = vmatprep.subr.mxu0 0.0
    %326 = vmatpush2.msra.mxu0 0.0
    %327 = vmatprep.subr.mxu0 0.0
    %328 = vmatpush2.msra.mxu0 0.0
    %329 = vmatprep.subr.mxu0 0.0
    %330 = vmatpush2.msra.mxu0 0.0
    %331 = vmatprep.subr.mxu0 0.0
    %332 = vmatpush2.msra.mxu0 0.0
    %333 = vmatprep.subr.mxu0 0.0
    %334 = vmatpush2.msra.mxu0 0.0
    %335 = vmatprep.subr.mxu0 0.0
    %336 = vmatpush2.msra.mxu0 0.0
    %337 = vmatprep.subr.mxu0 0.0
    %338 = vmatpush2.msra.mxu0 0.0
    %339 = vmatprep.subr.mxu0 0.0
    %340 = vmatpush2.msra.mxu0 0.0
    %341 = vmatprep.subr.mxu0 0.0
    %342 = vmatpush2.msra.mxu0 0.0
    %343 = vmatprep.subr.mxu0 0.0
    %344 = vmatpush2.msra.mxu0 0.0
    %345 = vmatprep.subr.mxu0 0.0
    %346 = vmatpush2.msra.mxu0 0.0
    %347 = vmatprep.subr.mxu0 0.0
    %348 = vmatpush2.msra.mxu0 0.0
    %349 = vmatprep.subr.mxu0 0.0
    %350 = vmatpush2.msra.mxu0 0.0
    %351 = vmatprep.mubr.f32.mxu0 0.0
    %352 = vmatmul.mubr.f32.gmra.mxu0 %v120
    %v353 = vpop.f32.mrf.mxu0
    %v354 = vadd.f32 0.0, %v353
    %v355 = vpop.f32.mrf.mxu0
    %356 = vdwg.mxu0
    %357 = vmatprep.subr.mxu0 0.0
    %358 = vmatpush1.msra.mxu0 0.0
    %359 = vmatprep.subr.mxu0 0.0
    %360 = vmatpush1.msra.mxu0 0.0
    %361 = vmatprep.subr.mxu0 0.0
    %362 = vmatpush1.msra.mxu0 0.0
    %363 = vmatprep.subr.mxu0 0.0
    %364 = vmatpush1.msra.mxu0 0.0
    %365 = vmatprep.subr.mxu0 0.0
    %366 = vmatpush1.msra.mxu0 0.0
    %367 = vmatprep.subr.mxu0 0.0
    %368 = vmatpush1.msra.mxu0 0.0
    %369 = vmatprep.subr.mxu0 0.0
    %370 = vmatpush1.msra.mxu0 0.0
    %371 = vmatprep.subr.mxu0 0.0
    %372 = vmatpush1.msra.mxu0 0.0
    %373 = vmatprep.subr.mxu0 0.0
    %374 = vmatpush1.msra.mxu0 0.0
    %375 = vmatprep.subr.mxu0 0.0
    %376 = vmatpush1.msra.mxu0 0.0
    %377 = vmatprep.subr.mxu0 0.0
    %378 = vmatpush1.msra.mxu0 0.0
    %379 = vmatprep.subr.mxu0 0.0
    %380 = vmatpush1.msra.mxu0 0.0
    %381 = vmatprep.subr.mxu0 0.0
    %382 = vmatpush1.msra.mxu0 %v282
    %383 = vmatprep.subr.mxu0 0.0
    %384 = vmatpush1.msra.mxu0 %v281
    %385 = vmatprep.subr.mxu0 0.0
    %386 = vmatpush1.msra.mxu0 %v280
    %387 = vmatprep.subr.mxu0 0.0
    %388 = vmatpush1.msra.mxu0 %v279
    %389 = vmatprep.subr.mxu0 0.0
    %390 = vmatpush2.msra.mxu0 0.0
    %391 = vmatprep.subr.mxu0 0.0
    %392 = vmatpush2.msra.mxu0 0.0
    %393 = vmatprep.subr.mxu0 0.0
    %394 = vmatpush2.msra.mxu0 0.0
    %395 = vmatprep.subr.mxu0 0.0
    %396 = vmatpush2.msra.mxu0 0.0
    %397 = vmatprep.subr.mxu0 0.0
    %398 = vmatpush2.msra.mxu0 0.0
    %399 = vmatprep.subr.mxu0 0.0
    %400 = vmatpush2.msra.mxu0 0.0
    %401 = vmatprep.subr.mxu0 0.0
    %402 = vmatpush2.msra.mxu0 0.0
    %403 = vmatprep.subr.mxu0 0.0
    %404 = vmatpush2.msra.mxu0 0.0
    %405 = vmatprep.subr.mxu0 0.0
    %406 = vmatpush2.msra.mxu0 0.0
    %407 = vmatprep.subr.mxu0 0.0
    %408 = vmatpush2.msra.mxu0 0.0
    %409 = vmatprep.subr.mxu0 0.0
    %410 = vmatpush2.msra.mxu0 0.0
    %411 = vmatprep.subr.mxu0 0.0
    %412 = vmatpush2.msra.mxu0 0.0
    %413 = vmatprep.subr.mxu0 0.0
    %414 = vmatpush2.msra.mxu0 0.0
    %415 = vmatprep.subr.mxu0 0.0
    %416 = vmatpush2.msra.mxu0 0.0
    %417 = vmatprep.subr.mxu0 0.0
    %418 = vmatpush2.msra.mxu0 0.0
    %419 = vmatprep.subr.mxu0 0.0
    %420 = vmatpush2.msra.mxu0 0.0
    %421 = vmatprep.mubr.f32.mxu0 0.0
    %422 = vmatmul.mubr.f32.gmra.mxu0 %v193
    %v423 = vpop.f32.mrf.mxu0
    %v424 = vadd.f32 %v354, %v423
    %v425 = vpop.f32.mrf.mxu0
    %426 = vdwg.mxu0
    %v427 = vld [vmem:[%s7] sm:$0x1]
    %v429 = vlaneseq
    %v430 = vshrl.u32 %v429, 7
    %v431 = vsub.s32 0, %v430
    %v432 = vrot.slane %v427, %v431
    %v434 = vadd.f32 %v424, %v432
    %v435 = vxor.u32 %v434, 2147483648
    %v436 = vmul.f32 %v435, 1.442695
    %v437 = vpow.pop %v436
    %v438 = vadd.f32 %v437, 1.0
    %v439 = vrcp.pop %v438
    %v440 = vmul.f32 1.0, %v439
    %v441 = vsub.f32 1.0, %v278
    %v442 = vsub.f32 %v441, %v440
    %v443 = vmul.f32 %v109, %v442
    %v444 = vadd.f32 %v278, %v443
    %445 = vst.msk [vmem:[#allocation13] sm:$0xff] %vm118, %v444
    // Predicated region
    $region58: #{tpu_custom_call.1} parent=1 // pred_check
      _
    $region59: #{tpu_custom_call.1} parent=1 // pred_check_branch
      %447 = sbr.rel (0) target = $region61
    $region60: #{tpu_custom_call.1} parent=1 // pred_region
      %s449 = ssub.s32 128, 128
      %450 = vsyncadd [#allocation4], %s449
      %s452 = sshll.u32 [#allocation13], 4
      %s453 = int_to_ptr.vmem [resolvable:$true] %s452
      %455 = dma.vmem_to_hbm [thread:$0]  %s453, 128, %s8, [#allocation4]
    $region61: #{tpu_custom_call.1} parent=1 // pred_fallthru
      _
    // Predicated region
    $region62: #{tpu_custom_call.1} parent=1 // pred_check
      _
    $region63: #{tpu_custom_call.1} parent=1 // pred_check_branch
      %457 = sbr.rel (0) target = $region65
    $region64: #{tpu_custom_call.1} parent=1 // pred_region
      %458 = dma.done [#allocation4], 128
    $region65: #{tpu_custom_call.1} parent=1 // pred_fallthru
      _
    %459 = vsyncpa [#allocation3], 1
    %460 = vsyncpa [#allocation6], 1
    %461 = vsyncpa [#allocation9], 1
    %462 = vsyncpa [#allocation12], 1
    %463 = vsyncpa [#allocation4], 1

</llo_original>
